<compile_context>
chip_gen: v6e
topology: v6e:2x2x1
jax: 0.10.0
libtpu: 0.0.40
codegen_flags: <defaults>
</compile_context>

<pallas_src>
import functools
import math

import jax
import jax.numpy as jnp
from jax.experimental import pallas as pl
from jax.experimental.pallas import tpu as pltpu

LANE = 128


def _round_up(x, m):
    return (x + m - 1) // m * m


def _down_proj_kernel(x_ref, w_ref, b_ref, o_ref, *, compute_dtype):
    # x_ref: (tg, 2, gw, 2C)   w_ref: (2, 2C, Ep)   b_ref: (1, Ep) f32
    # o_ref: (tg * gw, Ep)
    tg, _, gw, c2 = x_ref.shape
    x = x_ref[...].astype(compute_dtype)          # bf16 MXU operands
    x_top = x[:, 0].reshape(tg * gw, c2)          # kh = 0 pixels of each 2x2 window
    x_bot = x[:, 1].reshape(tg * gw, c2)          # kh = 1 pixels
    acc = jnp.dot(x_top, w_ref[0], preferred_element_type=jnp.float32)
    acc = acc + jnp.dot(x_bot, w_ref[1], preferred_element_type=jnp.float32)
    acc = acc + b_ref[...]                        # f32 bias, broadcast over rows
    o_ref[...] = acc.astype(o_ref.dtype)


def prepare_proj_params(weight, bias, *, param_dtype=jnp.bfloat16):
    """Pack Conv2d(kernel=2, stride=2) params once, outside the hot path.

    weight: (E, C, 2, 2), bias: (E,)
      -> w_packed: (2, 2C, Ep) with rows ordered (kw, c) per kh half, bf16,
         E zero-padded to a multiple of 128 for lane-dense stores
         b_packed: (1, Ep) f32
    """
    E, C, kh, kw = weight.shape
    assert (kh, kw) == (2, 2)
    Ep = _round_up(E, LANE)
    w = jnp.transpose(weight, (2, 3, 1, 0)).reshape(2, 2 * C, E)   # [kh, kw*C + c, e]
    w = jnp.pad(w, ((0, 0), (0, 0), (0, Ep - E))).astype(param_dtype)
    b = jnp.pad(bias.astype(jnp.float32), (0, Ep - E)).reshape(1, Ep)
    return w, b


@functools.partial(
    jax.jit, static_argnames=("img_size", "dim_out", "block_rows", "compute_dtype"))
def down_layer(x, w_packed, b_packed, *, img_size, dim_out, block_rows=1024,
               compute_dtype=jnp.bfloat16):
    """x: (B, N, C) with N = img_size**2  ->  (B, N // 4, dim_out)."""
    B, N, C = x.shape
    H = W = img_size
    assert N == H * W and H % 2 == 0 and W % 2 == 0
    gh, gw = H // 2, W // 2
    c2 = 2 * C
    BG = B * gh                          # row-groups; each yields gw output rows
    M = BG * gw                          # total output rows
    assert w_packed.shape[0] == 2 and w_packed.shape[1] == c2
    Ep = w_packed.shape[-1]

    # Free reshape (no data movement): (B, N, C) -> (B*gh, 2, gw, 2C).
    # Row-group bg = (b, gi); axis 1 is kh; the last dim packs (kw, c) and
    # matches the packed weight's row order.
    x4 = x.reshape(BG, 2, gw, c2)

    # --- tile selection ----------------------------------------------------
    # Output block's second-to-last dim (tg * gw) must be a sublane multiple.
    sub = 32 // jnp.dtype(x.dtype).itemsize       # 8 (f32) / 16 (bf16) / 32 (8-bit)
    g = sub // math.gcd(gw, sub)                  # tg granularity
    # ~block_rows output rows per step, but keep >= ~8 grid steps when possible
    # (v7x megacore split + DMA pipelined behind compute on all chips).
    tg = max(1, min(block_rows // max(gw, 1), pl.cdiv(BG, 8)))
    tg = max(g, (tg // g) * g)
    grid = (pl.cdiv(BG, tg),)

    cost = pl.CostEstimate(
        flops=2 * M * (2 * c2) * Ep,
        transcendentals=0,
        bytes_accessed=(x.size * x.dtype.itemsize
                        + w_packed.size * w_packed.dtype.itemsize
                        + b_packed.size * b_packed.dtype.itemsize
                        + M * Ep * x.dtype.itemsize),
    )

    out = pl.pallas_call(
        functools.partial(_down_proj_kernel, compute_dtype=compute_dtype),
        out_shape=jax.ShapeDtypeStruct((M, Ep), x.dtype),
        grid=grid,
        in_specs=[
            # Contiguous activation slab; the ragged last block reads garbage
            # rows that are never written back (clipped blocked writes).
            pl.BlockSpec((tg, 2, gw, c2), lambda i: (i, 0, 0, 0)),
            pl.BlockSpec((2, c2, Ep), lambda i: (0, 0, 0)),   # weight: VMEM-resident
            pl.BlockSpec((1, Ep), lambda i: (0, 0)),          # bias:   VMEM-resident
        ],
        out_specs=pl.BlockSpec((tg * gw, Ep), lambda i: (i, 0)),
        compiler_params=pltpu.CompilerParams(
            dimension_semantics=("parallel",),    # v7x: shard row tiles over both TCs
        ),
        cost_estimate=cost,
    )(x4, w_packed, b_packed)

    out = out.reshape(B, gh * gw, Ep)
    if Ep != dim_out:
        out = out[..., :dim_out]
    return out


if __name__ == "__main__":
    # Small config consistent with the module defaults (dim_in=64, dim_out=128);
    # img_size reduced so the demo stays tiny but still runs a multi-step grid.
    B = 2
    img_size = 32
    dim_in = 64
    dim_out = 128
    N = img_size * img_size

    key = jax.random.PRNGKey(0)
    kx, kw, kb = jax.random.split(key, 3)
    x = jax.random.normal(kx, (B, N, dim_in), dtype=jnp.float32)
    weight = jax.random.normal(kw, (dim_out, dim_in, 2, 2), dtype=jnp.float32) * 0.02
    bias = jax.random.normal(kb, (dim_out,), dtype=jnp.float32) * 0.02

    # Pack conv params once, outside the hot path (bf16 weight, f32 bias).
    w_packed, b_packed = prepare_proj_params(weight, bias)

    out = down_layer(x, w_packed, b_packed, img_size=img_size, dim_out=dim_out)
    out = jax.block_until_ready(out)

    # Reference: the module's forward in pure JAX (strided conv == patch matmul).
    x_img = jnp.transpose(x.reshape(B, img_size, img_size, dim_in), (0, 3, 1, 2))
    ref = jax.lax.conv_general_dilated(
        x_img, weight, window_strides=(2, 2), padding="VALID",
        dimension_numbers=("NCHW", "OIHW", "NCHW"),
        precision=jax.lax.Precision.HIGHEST,
    ) + bias.reshape(1, dim_out, 1, 1)
    ref = jnp.transpose(ref, (0, 2, 3, 1)).reshape(B, -1, dim_out)

    assert out.shape == (B, N // 4, dim_out), out.shape
    # bf16 MXU operands with f32 accumulation vs an f32 HIGHEST-precision conv
    # reference -> loosen the tolerance accordingly (error is ~1e-3 in practice).
    assert jnp.allclose(out, ref, atol=2e-2, rtol=2e-2), \
        float(jnp.max(jnp.abs(out - ref)))

    print("KERNEL_OK")
</pallas_src>

<mosaic_0001>
module attributes {stable_mosaic.version = 11 : i64} {
  func.func @_down_proj_kernel(%arg0: i32, %arg1: memref<4x2x16x128xf32, #tpu.memory_space<vmem>>, %arg2: memref<2x128x128xbf16, #tpu.memory_space<vmem>>, %arg3: memref<1x128xf32, #tpu.memory_space<vmem>>, %arg4: memref<64x128xf32, #tpu.memory_space<vmem>>) attributes {dimension_semantics = [#tpu.dimension_semantics<parallel>], iteration_bounds = array<i64: 8>, scalar_prefetch = 0 : i64, scratch_operands = 0 : i64, tpu.core_type = #tpu.core_type<tc>, window_params = [{transform_indices = @transform_0, window_bounds = array<i64: 4, 2, 16, 128>}, {pipeline_mode = #tpu.pipeline_mode<synchronous>, transform_indices = @transform_1, window_bounds = array<i64: 2, 128, 128>}, {pipeline_mode = #tpu.pipeline_mode<synchronous>, transform_indices = @transform_2, window_bounds = array<i64: 1, 128>}, {transform_indices = @transform_3, window_bounds = array<i64: 64, 128>}]} {
    %c0 = arith.constant 0 : index
    %c0_0 = arith.constant 0 : index
    %c0_1 = arith.constant 0 : index
    %c0_2 = arith.constant 0 : index
    %0 = vector.load %arg1[%c0, %c0_0, %c0_1, %c0_2] : memref<4x2x16x128xf32, #tpu.memory_space<vmem>>, vector<4x2x16x128xf32>
    %1 = arith.truncf %0 : vector<4x2x16x128xf32> to vector<4x2x16x128xbf16>
    %2 = vector.extract_strided_slice %1 {offsets = [0, 0, 0, 0], sizes = [4, 1, 16, 128], strides = [1, 1, 1, 1]} : vector<4x2x16x128xbf16> to vector<4x1x16x128xbf16>
    %3 = vector.shape_cast %2 : vector<4x1x16x128xbf16> to vector<4x16x128xbf16>
    %4 = vector.shape_cast %3 : vector<4x16x128xbf16> to vector<64x128xbf16>
    %5 = vector.extract_strided_slice %1 {offsets = [0, 1, 0, 0], sizes = [4, 1, 16, 128], strides = [1, 1, 1, 1]} : vector<4x2x16x128xbf16> to vector<4x1x16x128xbf16>
    %6 = vector.shape_cast %5 : vector<4x1x16x128xbf16> to vector<4x16x128xbf16>
    %7 = vector.shape_cast %6 : vector<4x16x128xbf16> to vector<64x128xbf16>
    %c0_3 = arith.constant 0 : index
    %c0_4 = arith.constant 0 : index
    %c0_5 = arith.constant 0 : index
    %8 = vector.load %arg2[%c0_3, %c0_4, %c0_5] : memref<2x128x128xbf16, #tpu.memory_space<vmem>>, vector<1x128x128xbf16>
    %9 = vector.shape_cast %8 : vector<1x128x128xbf16> to vector<128x128xbf16>
    %cst = arith.constant dense<0.000000e+00> : vector<64x128xf32>
    %10 = tpu.matmul %4, %9, %cst {dimension_numbers = #tpu.dot_dimension_numbers<[1], [0], [0], [1], [0, 0, 1, 1], [], []>} : vector<64x128xbf16>, vector<128x128xbf16>, vector<64x128xf32> -> vector<64x128xf32>
    %c1 = arith.constant 1 : index
    %c0_6 = arith.constant 0 : index
    %c0_7 = arith.constant 0 : index
    %11 = vector.load %arg2[%c1, %c0_6, %c0_7] : memref<2x128x128xbf16, #tpu.memory_space<vmem>>, vector<1x128x128xbf16>
    %12 = vector.shape_cast %11 : vector<1x128x128xbf16> to vector<128x128xbf16>
    %cst_8 = arith.constant dense<0.000000e+00> : vector<64x128xf32>
    %13 = tpu.matmul %7, %12, %cst_8 {dimension_numbers = #tpu.dot_dimension_numbers<[1], [0], [0], [1], [0, 0, 1, 1], [], []>} : vector<64x128xbf16>, vector<128x128xbf16>, vector<64x128xf32> -> vector<64x128xf32>
    %14 = arith.addf %10, %13 : vector<64x128xf32>
    %c0_9 = arith.constant 0 : index
    %c0_10 = arith.constant 0 : index
    %15 = vector.load %arg3[%c0_9, %c0_10] : memref<1x128xf32, #tpu.memory_space<vmem>>, vector<1x128xf32>
    %16 = vector.broadcast %15 : vector<1x128xf32> to vector<64x128xf32>
    %17 = arith.addf %14, %16 : vector<64x128xf32>
    %c0_11 = arith.constant 0 : index
    %c0_12 = arith.constant 0 : index
    %18 = vector.load %arg4[%c0_11, %c0_12] : memref<64x128xf32, #tpu.memory_space<vmem>>, vector<64x128xf32>
    tpu.vector_store %arg4[%c0_11, %c0_12], %17 {strides = array<i32>} : memref<64x128xf32, #tpu.memory_space<vmem>>, vector<64x128xf32>,
    return
  }
  func.func @transform_0(%arg0: i32) -> (i32, i32, i32, i32) {
    %c0_i32 = arith.constant 0 : i32
    %c0_i32_0 = arith.constant 0 : i32
    %c0_i32_1 = arith.constant 0 : i32
    %c0_i32_2 = arith.constant 0 : i32
    return %arg0, %c0_i32, %c0_i32_0, %c0_i32_1 : i32, i32, i32, i32
  }
  func.func @transform_1(%arg0: i32) -> (i32, i32, i32) {
    %c0_i32 = arith.constant 0 : i32
    %c0_i32_0 = arith.constant 0 : i32
    %c0_i32_1 = arith.constant 0 : i32
    %c0_i32_2 = arith.constant 0 : i32
    return %c0_i32, %c0_i32_0, %c0_i32_1 : i32, i32, i32
  }
  func.func @transform_2(%arg0: i32) -> (i32, i32) {
    %c0_i32 = arith.constant 0 : i32
    %c0_i32_0 = arith.constant 0 : i32
    %c0_i32_1 = arith.constant 0 : i32
    return %c0_i32, %c0_i32_0 : i32, i32
  }
  func.func @transform_3(%arg0: i32) -> (i32, i32) {
    %c0_i32 = arith.constant 0 : i32
    %c0_i32_0 = arith.constant 0 : i32
    return %arg0, %c0_i32 : i32, i32
  }
}

</mosaic_0001>

<llo_original>
// kernel: down_layer.1
$region0: #{down_layer.1}
  #allocation0 [shape = 'u32[]', space=smem, size = 0x4, offset = 0x4, fixed_abs, tag = 'smem constant byte address 0x4 - core index']
  #allocation1 [shape = 'u32[144,128]{1,0:T(1,128)}', space=vmem, size = 0x12000, scoped, tag = 'internal scratch']
  %s0 = inlined_call_operand.vmem [shape: f32[32,2,16,128], index: 0, kind: input, shape index: {}]
  %s1 = inlined_call_operand.vmem [shape: bf16[2,128,128], index: 1, kind: input, shape index: {}]
  %s2 = inlined_call_operand.vmem [shape: f32[1,128], index: 2, kind: input, shape index: {}]
  %s3 = inlined_call_operand.hbm [shape: f32[512,128], index: 3, kind: output, shape index: {}]
  %s4 = sld [smem:[#allocation0]]
  $region45: #{down_layer.1} parent=0
    _
  %s6 = ssub.s32 1, %s4
  %s7 = scalar_select 0, %s6, %s4
  $region1: #{down_layer.1} parent=0
    #allocation2 [shape = 'u8[65536]{0}', space=vmem, size = 0x10000, scoped, tag = 'output window, operand 0']
    #allocation3 [shape = 's32[2]{0}', space=sflag, size = 0x8, scoped, tag = 'scoped memory for down_layer.1']
    %8 = vsyncpa [#allocation3], 0
    %s9 = scalar_lea.sflag [#allocation3], 1
    %10 = vsyncpa %s9, 0
    loop: start=0, step=1, limit=10
    $region2: #{down_layer.1} parent=1 // loop_pre_header
      _
    $region3: #{down_layer.1} parent=1 // loop_header
      %s12 = sphi 0, %s16
      %p13 = scmp.ge.s32.totalorder %s12, 10
      %s22 = sphi 0, %s24
      %s25 = sphi 0, %s22
      %s26 = sphi 0, %s25
      %s42 = sphi 0, %s26
      %s46 = sphi 0, %s46
      %s48 = sphi 0, %s46
      %s49 = sphi 0, %s48
      %s63 = sphi 0, %s49
      %s67 = sphi 0, %s67
      %s69 = sphi 0, %s67
      %s70 = sphi 0, %s69
      %s84 = sphi 0, %s70
      %s90 = sphi 0, %s92
      %s93 = sphi 0, %s90
      %s94 = sphi 0, %s93
      %s110 = sphi 0, %s94
    $region4: #{down_layer.1} parent=1 // loop_header_branch
      %15 = sbr.rel (%p13) target = $region8
    $region5: #{down_layer.1} parent=1 // loop_body
      %s17 = ssub.s32 %s12, 1
      %s18 = ssub.s32 %s12, 2
      %s19 = sadd.s32 %s12, 1
      %s20 = ssub.s32 %s12, %s19
      %p21 = scmp.eq.s32.totalorder %s20, 0
      %s23 = sadd.s32 %s22, 1
      %s24 = scalar_select %p21, %s22, %s23
      %p27 = pneg %p21
      %p28 = scmp.eq.s32.totalorder %s12, 7
      %p29 = por %p27, %p28
      %p30 = scmp.ne.s32.totalorder %s22, %s25
      %p31 = scmp.eq.s32.totalorder %s12, 0
      %p32 = por %p30, %p31
      %p33 = scmp.ne.s32.totalorder %s22, %s25
      %p34 = scmp.eq.s32.totalorder %s17, 7
      %p35 = por %p33, %p34
      %p36 = scmp.ne.s32.totalorder %s25, %s26
      %p37 = scmp.eq.s32.totalorder %s17, 0
      %p38 = por %p36, %p37
      %p39 = scmp.ne.s32.totalorder %s25, %s26
      %p40 = scmp.eq.s32.totalorder %s18, 7
      %p41 = por %p39, %p40
      %p43 = scmp.ne.s32.totalorder %s26, %s42
      %p44 = scmp.eq.s32.totalorder %s18, 0
      %p45 = por %p43, %p44
      %s47 = sadd.s32 %s46, 1
      %p50 = scmp.eq.s32.totalorder %s12, 7
      %p51 = scmp.ne.s32.totalorder %s46, %s48
      %p52 = scmp.eq.s32.totalorder %s12, 0
      %p53 = por %p51, %p52
      %p54 = scmp.ne.s32.totalorder %s46, %s48
      %p55 = scmp.eq.s32.totalorder %s17, 7
      %p56 = por %p54, %p55
      %p57 = scmp.ne.s32.totalorder %s48, %s49
      %p58 = scmp.eq.s32.totalorder %s17, 0
      %p59 = por %p57, %p58
      %p60 = scmp.ne.s32.totalorder %s48, %s49
      %p61 = scmp.eq.s32.totalorder %s18, 7
      %p62 = por %p60, %p61
      %p64 = scmp.ne.s32.totalorder %s49, %s63
      %p65 = scmp.eq.s32.totalorder %s18, 0
      %p66 = por %p64, %p65
      %s68 = sadd.s32 %s67, 1
      %p71 = scmp.eq.s32.totalorder %s12, 7
      %p72 = scmp.ne.s32.totalorder %s67, %s69
      %p73 = scmp.eq.s32.totalorder %s12, 0
      %p74 = por %p72, %p73
      %p75 = scmp.ne.s32.totalorder %s67, %s69
      %p76 = scmp.eq.s32.totalorder %s17, 7
      %p77 = por %p75, %p76
      %p78 = scmp.ne.s32.totalorder %s69, %s70
      %p79 = scmp.eq.s32.totalorder %s17, 0
      %p80 = por %p78, %p79
      %p81 = scmp.ne.s32.totalorder %s69, %s70
      %p82 = scmp.eq.s32.totalorder %s18, 7
      %p83 = por %p81, %p82
      %p85 = scmp.ne.s32.totalorder %s70, %s84
      %p86 = scmp.eq.s32.totalorder %s18, 0
      %p87 = por %p85, %p86
      %s88 = ssub.s32 %s12, %s19
      %p89 = scmp.eq.s32.totalorder %s88, 0
      %s91 = sadd.s32 %s90, 1
      %s92 = scalar_select %p89, %s90, %s91
      %p95 = pneg %p89
      %p96 = scmp.eq.s32.totalorder %s12, 7
      %p97 = por %p95, %p96
      %p98 = scmp.ne.s32.totalorder %s90, %s93
      %p99 = scmp.eq.s32.totalorder %s12, 0
      %p100 = por %p98, %p99
      %p101 = scmp.ne.s32.totalorder %s90, %s93
      %p102 = scmp.eq.s32.totalorder %s17, 7
      %p103 = por %p101, %p102
      %p104 = scmp.ne.s32.totalorder %s93, %s94
      %p105 = scmp.eq.s32.totalorder %s17, 0
      %p106 = por %p104, %p105
      %p107 = scmp.ne.s32.totalorder %s93, %s94
      %p108 = scmp.eq.s32.totalorder %s18, 7
      %p109 = por %p107, %p108
      %p111 = scmp.ne.s32.totalorder %s94, %s110
      %p112 = scmp.eq.s32.totalorder %s18, 0
      %p113 = por %p111, %p112
      %p114 = scmp.le.s32.totalorder 1, %s12
      %p115 = scmp.lt.s32.totalorder %s12, 9
      %p116 = pnand %p114, %p115
      %p117 = pneg %p116
      // Predicated region
      $region9: #{down_layer.1} parent=5 // pred_check
        _
      $region10: #{down_layer.1} parent=5 // pred_check_branch
        %119 = sbr.rel (%p116) target = $region12
      $region11: #{down_layer.1} parent=5 // pred_region
        %s120 = ssub.s32 %s12, 1
        // Predicated region
        $region13: #{down_layer.1} parent=11 // pred_check
          %p121 = pneg %p59
        $region14: #{down_layer.1} parent=11 // pred_check_branch
          %123 = sbr.rel (%p121) target = $region16
        $region15: #{down_layer.1} parent=11 // pred_region
          _
        $region16: #{down_layer.1} parent=11 // pred_fallthru
          _
        // Predicated region
        $region17: #{down_layer.1} parent=11 // pred_check
          %p124 = pneg %p80
        $region18: #{down_layer.1} parent=11 // pred_check_branch
          %126 = sbr.rel (%p124) target = $region20
        $region19: #{down_layer.1} parent=11 // pred_region
          _
        $region20: #{down_layer.1} parent=11 // pred_fallthru
          _
      $region12: #{down_layer.1} parent=5 // pred_fallthru
        _
      %p127 = scmp.lt.s32.totalorder %s12, 8
      // Predicated region
      $region21: #{down_layer.1} parent=5 // pred_check
        %p128 = pneg %p127
      $region22: #{down_layer.1} parent=5 // pred_check_branch
        %130 = sbr.rel (%p128) target = $region24
      $region23: #{down_layer.1} parent=5 // pred_region
        // Predicated region
        $region25: #{down_layer.1} parent=23 // pred_check
          %p131 = pneg %p32
        $region26: #{down_layer.1} parent=23 // pred_check_branch
          %133 = sbr.rel (%p131) target = $region28
        $region27: #{down_layer.1} parent=23 // pred_region
          %s134 = smul.u32 4, %s12
          %p135 = scmp.lt.s32.totalorder %s134, 31
          %s136 = scalar_select %p135, %s134, 31
          %s137 = smul.addr %s136, 4
          %s138 = smul.addr %s137, 8
          %s139 = scalar_lea.vmem %s0, %s138
          %s140 = smul.u32 4, %s12
        $region28: #{down_layer.1} parent=23 // pred_fallthru
          _
      $region24: #{down_layer.1} parent=5 // pred_fallthru
        _
      %p141 = scmp.le.s32.totalorder 1, %s12
      %p142 = scmp.lt.s32.totalorder %s12, 9
      %p143 = pnand %p141, %p142
      %p144 = pneg %p143
      // Predicated region
      $region29: #{down_layer.1} parent=5 // pred_check
        _
      $region30: #{down_layer.1} parent=5 // pred_check_branch
        %146 = sbr.rel (%p143) target = $region32
      $region31: #{down_layer.1} parent=5 // pred_region
        %s147 = ssub.s32 %s12, 1
        %s148 = smul.u32 4, %s17
        %p149 = scmp.lt.s32.totalorder %s148, 31
        %s150 = scalar_select %p149, %s148, 31
        %s151 = smul.addr %s150, 4
        %s152 = smul.addr %s151, 8
        %s153 = scalar_lea.vmem %s0, %s152
        %p154 = pneg %p38
        %p155 = pneg %p35
        %p156 = pneg %p59
        %p157 = pneg %p56
        %p158 = pneg %p80
        %p159 = pneg %p77
        %p160 = pneg %p106
        %p161 = pneg %p103
        %s162 = sand.u32 %s93, 1
        %s163 = scalar_lea.sflag [#allocation3], %s162
        %s164 = sand.u32 %s93, 1
        %s165 = smul.addr %s164, 64
        %s166 = scalar_lea.vmem [#allocation2], %s165
        %s167 = smul.u32 4, %s17
        %p168 = scmp.lt.s32.totalorder %s167, 31
        %s169 = scalar_select %p168, %s167, 31
        %s170 = smul.addr %s169, 4
        %s171 = smul.addr %s170, 8
        %s172 = scalar_lea.vmem %s0, %s171
        %s173 = smul.u32 4, %s17
        %s174 = smul.u32 8, %s17
        %v176 = vld [vmem:[%s172] sm:$0xff]
        %v177 = vld [vmem:[%s172 + $0x8] sm:$0xff]
        %v178 = vld [vmem:[%s172 + $0x10] sm:$0xff]
        %v179 = vld [vmem:[%s172 + $0x18] sm:$0xff]
        %v180 = vld [vmem:[%s172 + $0x20] sm:$0xff]
        %v181 = vld [vmem:[%s172 + $0x28] sm:$0xff]
        %v182 = vld [vmem:[%s172 + $0x30] sm:$0xff]
        %v183 = vld [vmem:[%s172 + $0x38] sm:$0xff]
        %v184 = vld [vmem:[%s172 + $0x40] sm:$0xff]
        %v185 = vld [vmem:[%s172 + $0x48] sm:$0xff]
        %v186 = vld [vmem:[%s172 + $0x50] sm:$0xff]
        %v187 = vld [vmem:[%s172 + $0x58] sm:$0xff]
        %v188 = vld [vmem:[%s172 + $0x60] sm:$0xff]
        %v189 = vld [vmem:[%s172 + $0x68] sm:$0xff]
        %v190 = vld [vmem:[%s172 + $0x70] sm:$0xff]
        %v191 = vld [vmem:[%s172 + $0x78] sm:$0xff]
        %v192 = vpack.c.bf16 %v177, %v176
        %v193 = vpack.c.bf16 %v179, %v178
        %v194 = vpack.c.bf16 %v181, %v180
        %v195 = vpack.c.bf16 %v183, %v182
        %v196 = vpack.c.bf16 %v185, %v184
        %v197 = vpack.c.bf16 %v187, %v186
        %v198 = vpack.c.bf16 %v189, %v188
        %v199 = vpack.c.bf16 %v191, %v190
        %v200 = vld [vmem:[%s1] sm:$0xf]
        %v201 = vld [vmem:[%s1 + $0x4] sm:$0xf]
        %v202 = vld [vmem:[%s1 + $0x8] sm:$0xf]
        %v203 = vld [vmem:[%s1 + $0xc] sm:$0xf]
        %v204 = vld [vmem:[%s1 + $0x10] sm:$0xf]
        %v205 = vld [vmem:[%s1 + $0x14] sm:$0xf]
        %v206 = vld [vmem:[%s1 + $0x18] sm:$0xf]
        %v207 = vld [vmem:[%s1 + $0x1c] sm:$0xf]
        %v208 = vld [vmem:[%s1 + $0x20] sm:$0xf]
        %v209 = vld [vmem:[%s1 + $0x24] sm:$0xf]
        %v210 = vld [vmem:[%s1 + $0x28] sm:$0xf]
        %v211 = vld [vmem:[%s1 + $0x2c] sm:$0xf]
        %v212 = vld [vmem:[%s1 + $0x30] sm:$0xf]
        %v213 = vld [vmem:[%s1 + $0x34] sm:$0xf]
        %v214 = vld [vmem:[%s1 + $0x38] sm:$0xf]
        %v215 = vld [vmem:[%s1 + $0x3c] sm:$0xf]
        %s216 = scalar_lea.vmem %s1, 64
        %v217 = vld [vmem:[%s216] sm:$0xf]
        %v218 = vld [vmem:[%s216 + $0x4] sm:$0xf]
        %v219 = vld [vmem:[%s216 + $0x8] sm:$0xf]
        %v220 = vld [vmem:[%s216 + $0xc] sm:$0xf]
        %v221 = vld [vmem:[%s216 + $0x10] sm:$0xf]
        %v222 = vld [vmem:[%s216 + $0x14] sm:$0xf]
        %v223 = vld [vmem:[%s216 + $0x18] sm:$0xf]
        %v224 = vld [vmem:[%s216 + $0x1c] sm:$0xf]
        %v225 = vld [vmem:[%s216 + $0x20] sm:$0xf]
        %v226 = vld [vmem:[%s216 + $0x24] sm:$0xf]
        %v227 = vld [vmem:[%s216 + $0x28] sm:$0xf]
        %v228 = vld [vmem:[%s216 + $0x2c] sm:$0xf]
        %v229 = vld [vmem:[%s216 + $0x30] sm:$0xf]
        %v230 = vld [vmem:[%s216 + $0x34] sm:$0xf]
        %v231 = vld [vmem:[%s216 + $0x38] sm:$0xf]
        %v232 = vld [vmem:[%s216 + $0x3c] sm:$0xf]
        %v249 = vunpack.c.l.b16 %v217
        %v250 = vunpack.c.l.b16 %v218
        %v251 = vunpack.c.l.b16 %v219
        %v252 = vunpack.c.l.b16 %v220
        %v253 = vunpack.c.l.b16 %v221
        %v254 = vunpack.c.l.b16 %v222
        %v255 = vunpack.c.l.b16 %v223
        %v256 = vunpack.c.l.b16 %v224
        %v257 = vunpack.c.l.b16 %v225
        %v258 = vunpack.c.l.b16 %v226
        %v259 = vunpack.c.l.b16 %v227
        %v260 = vunpack.c.l.b16 %v228
        %v261 = vunpack.c.l.b16 %v229
        %v262 = vunpack.c.l.b16 %v230
        %v263 = vunpack.c.l.b16 %v231
        %v264 = vunpack.c.l.b16 %v232
        %v265 = vpack.c.b16 %v250, %v249
        %v266 = vpack.c.b16 %v252, %v251
        %v267 = vpack.c.b16 %v254, %v253
        %v268 = vpack.c.b16 %v256, %v255
        %v269 = vpack.c.b16 %v258, %v257
        %v270 = vpack.c.b16 %v260, %v259
        %v271 = vpack.c.b16 %v262, %v261
        %v272 = vpack.c.b16 %v264, %v263
        %281 = vmatprep.subr.bf16.mxu0 0
        %282 = vmatpush1.bf16.msra.mxu0 %v272
        %283 = vmatprep.subr.bf16.mxu0 0
        %284 = vmatpush1.bf16.msra.mxu0 %v271
        %285 = vmatprep.subr.bf16.mxu0 0
        %286 = vmatpush1.bf16.msra.mxu0 %v270
        %287 = vmatprep.subr.bf16.mxu0 0
        %288 = vmatpush1.bf16.msra.mxu0 %v269
        %289 = vmatprep.subr.bf16.mxu0 0
        %290 = vmatpush1.bf16.msra.mxu0 %v268
        %291 = vmatprep.subr.bf16.mxu0 0
        %292 = vmatpush1.bf16.msra.mxu0 %v267
        %293 = vmatprep.subr.bf16.mxu0 0
        %294 = vmatpush1.bf16.msra.mxu0 %v266
        %295 = vmatprep.subr.bf16.mxu0 0
        %296 = vmatpush1.bf16.msra.mxu0 %v265
        %297 = vmatprep.subr.bf16.mxu0 0
        %298 = vmatpush2.bf16.msra.mxu0 0
        %299 = vmatprep.subr.bf16.mxu0 0
        %300 = vmatpush2.bf16.msra.mxu0 0
        %301 = vmatprep.subr.bf16.mxu0 0
        %302 = vmatpush2.bf16.msra.mxu0 0
        %303 = vmatprep.subr.bf16.mxu0 0
        %304 = vmatpush2.bf16.msra.mxu0 0
        %305 = vmatprep.subr.bf16.mxu0 0
        %306 = vmatpush2.bf16.msra.mxu0 0
        %307 = vmatprep.subr.bf16.mxu0 0
        %308 = vmatpush2.bf16.msra.mxu0 0
        %309 = vmatprep.subr.bf16.mxu0 0
        %310 = vmatpush2.bf16.msra.mxu0 0
        %311 = vmatprep.subr.bf16.mxu0 0
        %312 = vmatpush2.bf16.msra.mxu0 0
        %313 = vmatprep.mubr.bf16.mxu0 0
        %314 = vmatmul.mubr.bf16.gmra.mxu0 %v193
        %v315 = vpop.f32.mrf.mxu0
        %v316 = vadd.f32 0.0, %v315
        %v317 = vpop.f32.mrf.mxu0
        %v318 = vpop.f32.mrf.mxu0
        %v319 = vadd.f32 0.0, %v318
        %v320 = vpop.f32.mrf.mxu0
        %321 = vmatprep.mubr.bf16.mxu0 0
        %322 = vmatmul.mubr.bf16.gmra.mxu0 %v195
        %v323 = vpop.f32.mrf.mxu0
        %v324 = vadd.f32 0.0, %v323
        %v325 = vpop.f32.mrf.mxu0
        %v326 = vpop.f32.mrf.mxu0
        %v327 = vadd.f32 0.0, %v326
        %v328 = vpop.f32.mrf.mxu0
        %329 = vmatprep.mubr.bf16.mxu0 0
        %330 = vmatmul.mubr.bf16.gmra.mxu0 %v197
        %v331 = vpop.f32.mrf.mxu0
        %v332 = vadd.f32 0.0, %v331
        %v333 = vpop.f32.mrf.mxu0
        %v334 = vpop.f32.mrf.mxu0
        %v335 = vadd.f32 0.0, %v334
        %v336 = vpop.f32.mrf.mxu0
        %337 = vmatprep.mubr.bf16.mxu0 0
        %338 = vmatmul.mubr.bf16.gmra.mxu0 %v199
        %v339 = vpop.f32.mrf.mxu0
        %v340 = vadd.f32 0.0, %v339
        %v341 = vpop.f32.mrf.mxu0
        %v342 = vpop.f32.mrf.mxu0
        %v343 = vadd.f32 0.0, %v342
        %v344 = vpop.f32.mrf.mxu0
        %345 = vdwg.mxu0
        %v362 = vunpack.c.l.b16 %v200
        %v363 = vunpack.c.l.b16 %v201
        %v364 = vunpack.c.l.b16 %v202
        %v365 = vunpack.c.l.b16 %v203
        %v366 = vunpack.c.l.b16 %v204
        %v367 = vunpack.c.l.b16 %v205
        %v368 = vunpack.c.l.b16 %v206
        %v369 = vunpack.c.l.b16 %v207
        %v370 = vunpack.c.l.b16 %v208
        %v371 = vunpack.c.l.b16 %v209
        %v372 = vunpack.c.l.b16 %v210
        %v373 = vunpack.c.l.b16 %v211
        %v374 = vunpack.c.l.b16 %v212
        %v375 = vunpack.c.l.b16 %v213
        %v376 = vunpack.c.l.b16 %v214
        %v377 = vunpack.c.l.b16 %v215
        %v378 = vpack.c.b16 %v363, %v362
        %v379 = vpack.c.b16 %v365, %v364
        %v380 = vpack.c.b16 %v367, %v366
        %v381 = vpack.c.b16 %v369, %v368
        %v382 = vpack.c.b16 %v371, %v370
        %v383 = vpack.c.b16 %v373, %v372
        %v384 = vpack.c.b16 %v375, %v374
        %v385 = vpack.c.b16 %v377, %v376
        %394 = vmatprep.subr.bf16.mxu0 0
        %395 = vmatpush1.bf16.msra.mxu0 %v385
        %396 = vmatprep.subr.bf16.mxu0 0
        %397 = vmatpush1.bf16.msra.mxu0 %v384
        %398 = vmatprep.subr.bf16.mxu0 0
        %399 = vmatpush1.bf16.msra.mxu0 %v383
        %400 = vmatprep.subr.bf16.mxu0 0
        %401 = vmatpush1.bf16.msra.mxu0 %v382
        %402 = vmatprep.subr.bf16.mxu0 0
        %403 = vmatpush1.bf16.msra.mxu0 %v381
        %404 = vmatprep.subr.bf16.mxu0 0
        %405 = vmatpush1.bf16.msra.mxu0 %v380
        %406 = vmatprep.subr.bf16.mxu0 0
        %407 = vmatpush1.bf16.msra.mxu0 %v379
        %408 = vmatprep.subr.bf16.mxu0 0
        %409 = vmatpush1.bf16.msra.mxu0 %v378
        %410 = vmatprep.subr.bf16.mxu0 0
        %411 = vmatpush2.bf16.msra.mxu0 0
        %412 = vmatprep.subr.bf16.mxu0 0
        %413 = vmatpush2.bf16.msra.mxu0 0
        %414 = vmatprep.subr.bf16.mxu0 0
        %415 = vmatpush2.bf16.msra.mxu0 0
        %416 = vmatprep.subr.bf16.mxu0 0
        %417 = vmatpush2.bf16.msra.mxu0 0
        %418 = vmatprep.subr.bf16.mxu0 0
        %419 = vmatpush2.bf16.msra.mxu0 0
        %420 = vmatprep.subr.bf16.mxu0 0
        %421 = vmatpush2.bf16.msra.mxu0 0
        %422 = vmatprep.subr.bf16.mxu0 0
        %423 = vmatpush2.bf16.msra.mxu0 0
        %424 = vmatprep.subr.bf16.mxu0 0
        %425 = vmatpush2.bf16.msra.mxu0 0
        %426 = vmatprep.mubr.bf16.mxu0 0
        %427 = vmatmul.mubr.bf16.gmra.mxu0 %v192
        %v428 = vpop.f32.mrf.mxu0
        %v429 = vadd.f32 %v316, %v428
        %v430 = vpop.f32.mrf.mxu0
        %v431 = vpop.f32.mrf.mxu0
        %v432 = vadd.f32 %v319, %v431
        %v433 = vpop.f32.mrf.mxu0
        %434 = vmatprep.mubr.bf16.mxu0 0
        %435 = vmatmul.mubr.bf16.gmra.mxu0 %v194
        %v436 = vpop.f32.mrf.mxu0
        %v437 = vadd.f32 %v324, %v436
        %v438 = vpop.f32.mrf.mxu0
        %v439 = vpop.f32.mrf.mxu0
        %v440 = vadd.f32 %v327, %v439
        %v441 = vpop.f32.mrf.mxu0
        %442 = vmatprep.mubr.bf16.mxu0 0
        %443 = vmatmul.mubr.bf16.gmra.mxu0 %v196
        %v444 = vpop.f32.mrf.mxu0
        %v445 = vadd.f32 %v332, %v444
        %v446 = vpop.f32.mrf.mxu0
        %v447 = vpop.f32.mrf.mxu0
        %v448 = vadd.f32 %v335, %v447
        %v449 = vpop.f32.mrf.mxu0
        %450 = vmatprep.mubr.bf16.mxu0 0
        %451 = vmatmul.mubr.bf16.gmra.mxu0 %v198
        %v452 = vpop.f32.mrf.mxu0
        %v453 = vadd.f32 %v340, %v452
        %v454 = vpop.f32.mrf.mxu0
        %v455 = vpop.f32.mrf.mxu0
        %v456 = vadd.f32 %v343, %v455
        %v457 = vpop.f32.mrf.mxu0
        %458 = vdwg.mxu0
        %v459 = vld [vmem:[%s2] sm:$0x1]
        %v461 = vlaneseq
        %v462 = vshrl.u32 %v461, 7
        %v463 = vsub.s32 0, %v462
        %v464 = vrot.slane %v459, %v463
        %v466 = vadd.f32 %v429, %v464
        %v467 = vadd.f32 %v432, %v464
        %v468 = vadd.f32 %v437, %v464
        %v469 = vadd.f32 %v440, %v464
        %v470 = vadd.f32 %v445, %v464
        %v471 = vadd.f32 %v448, %v464
        %v472 = vadd.f32 %v453, %v464
        %v473 = vadd.f32 %v456, %v464
        %474 = vst [vmem:[%s166] sm:$0xff] %v466
        %475 = vst [vmem:[%s166 + $0x8] sm:$0xff] %v467
        %476 = vst [vmem:[%s166 + $0x10] sm:$0xff] %v468
        %477 = vst [vmem:[%s166 + $0x18] sm:$0xff] %v469
        %478 = vst [vmem:[%s166 + $0x20] sm:$0xff] %v470
        %479 = vst [vmem:[%s166 + $0x28] sm:$0xff] %v471
        %480 = vst [vmem:[%s166 + $0x30] sm:$0xff] %v472
        %481 = vst [vmem:[%s166 + $0x38] sm:$0xff] %v473
        %s482 = sand.u32 %s93, 1
        %s483 = scalar_lea.sflag [#allocation3], %s482
        %s484 = sand.u32 %s93, 1
        %s485 = smul.addr %s484, 64
        %s486 = scalar_lea.vmem [#allocation2], %s485
        // Predicated region
        $region33: #{down_layer.1} parent=31 // pred_check
          %p487 = pneg %p103
        $region34: #{down_layer.1} parent=31 // pred_check_branch
          %489 = sbr.rel (%p487) target = $region36
        $region35: #{down_layer.1} parent=31 // pred_region
          %s490 = smul.u32 8, %s17
          %s492 = ssub.s32 1024, 1024
          %493 = vsyncadd %s483, %s492
          %s494 = smul.addr %s490, 128
          %s495 = scalar_lea.hbm %s3, %s494
          %s496 = sshll.u32 %s486, 4
          %s497 = int_to_ptr.vmem [resolvable:$true] %s496
          %502 = dma.vmem_to_hbm [thread:$0]  %s497, 1024, %s495, %s483, 128, 128, 8
        $region36: #{down_layer.1} parent=31 // pred_fallthru
          _
      $region32: #{down_layer.1} parent=5 // pred_fallthru
        _
      %p503 = scmp.le.s32.totalorder 2, %s12
      // Predicated region
      $region37: #{down_layer.1} parent=5 // pred_check
        %p504 = pneg %p503
      $region38: #{down_layer.1} parent=5 // pred_check_branch
        %506 = sbr.rel (%p504) target = $region40
      $region39: #{down_layer.1} parent=5 // pred_region
        %s507 = ssub.s32 %s12, 2
        // Predicated region
        $region41: #{down_layer.1} parent=39 // pred_check
          %p508 = pneg %p109
        $region42: #{down_layer.1} parent=39 // pred_check_branch
          %510 = sbr.rel (%p508) target = $region44
        $region43: #{down_layer.1} parent=39 // pred_region
          %s511 = sand.u32 %s94, 1
          %s512 = scalar_lea.sflag [#allocation3], %s511
          %s513 = sand.u32 %s94, 1
          %s514 = smul.addr %s513, 64
          %s515 = scalar_lea.vmem [#allocation2], %s514
          %516 = dma.done %s512, 1024
        $region44: #{down_layer.1} parent=39 // pred_fallthru
          _
      $region40: #{down_layer.1} parent=5 // pred_fallthru
        _
    $region6: #{down_layer.1} parent=1 // loop_footer
      %s16 = sadd.s32 1, %s12
    $region7: #{down_layer.1} parent=1 // loop_footer_branch
      %11 = sbr.rel target = $region3
    $region8: #{down_layer.1} parent=1 // loop_exit
      _
    %517 = vsyncpa [#allocation3], 1
    %s518 = scalar_lea.sflag [#allocation3], 1
    %519 = vsyncpa %s518, 1

</llo_original>
